<compile_context>
chip_gen: v6e
topology: v6e:2x2x1
jax: 0.10.0
libtpu: 0.0.40
codegen_flags: <defaults>
</compile_context>

<pallas_src>
import jax
import jax.numpy as jnp
from jax.experimental import pallas as pl
from jax.experimental.pallas import tpu as pltpu  # noqa: F401  (kept for CompilerParams at larger sizes)

_BN_GAMMA = 0.3333
_BN_EPS = 1e-5


# ------------------------- Pallas kernel -------------------------

def _mvconv_fused_kernel(w_ref, p_ref, b_ref, o_ref):
    """Fused MVConv forward.

    w_ref: [3*Cout, K]  bf16  (main / folded-left / folded-right weights, stacked)
    p_ref: [K, M]       bf16  (im2col patches, transposed so M is lane-dense)
    b_ref: [3*Cout, 1]  f32   (conv biases; cancel through batch-stat BN, kept for fidelity)
    o_ref: [Cout, M]    f32   (BN(main) + BN(left) + BN(right))
    """
    cout = o_ref.shape[0]

    # One lane-dense MXU GEMM for all three branches, f32 accumulation.
    y = jnp.dot(w_ref[...], p_ref[...], preferred_element_type=jnp.float32)
    y = y + b_ref[...]

    # Training-mode BatchNorm: biased batch stats over M (the lane axis),
    # gamma = 0.3333 (constant from module init), beta = 0.  Stats for all
    # three branches are computed in one vectorized pass over [3*Cout, M]
    # (lane-axis reductions -> XLU, rsqrt -> EUP: both off the VALU slots).
    mean = jnp.mean(y, axis=1, keepdims=True)
    var = jnp.mean(jnp.square(y - mean), axis=1, keepdims=True)
    yn = _BN_GAMMA * (y - mean) * jax.lax.rsqrt(var + _BN_EPS)

    o_ref[...] = yn[0:cout] + yn[cout:2 * cout] + yn[2 * cout:3 * cout]


def mvconv_fused_call(w_mat_bf16, patches_t_bf16, bias_col_f32, cout):
    c3, K = w_mat_bf16.shape
    K2, M = patches_t_bf16.shape
    assert K == K2 and c3 == 3 * cout

    # Single-block design: whole problem lives in VMEM for one grid step, which
    # lets BN use exact full-batch statistics in the epilogue.
    # TODO(synk): for large M (e.g. full CIFAR batches) tile M with a "parallel"
    # grid (also feeds both v7x TensorCores) and a two-pass sum / sum-of-squares
    # BN reduction; the single-block form hits the scoped VMEM limit first on v5e.
    vmem_est = 2 * (c3 * K * 2 + K * M * 2 + c3 * 4 + cout * M * 4)
    assert vmem_est < 12 * 1024 * 1024, "single-block MVConv kernel would not fit VMEM"

    return pl.pallas_call(
        _mvconv_fused_kernel,
        out_shape=jax.ShapeDtypeStruct((cout, M), jnp.float32),
        in_specs=[pl.BlockSpec((c3, K), lambda: (0, 0)),
                  pl.BlockSpec((K, M), lambda: (0, 0)),
                  pl.BlockSpec((c3, 1), lambda: (0, 0))],
        out_specs=pl.BlockSpec((cout, M), lambda: (0, 0)),
    )(w_mat_bf16, patches_t_bf16, bias_col_f32)


# ------------------------- wrapper (pure-JAX data movement) -------------------------

def _im2col_transposed(x_nhwc, k, stride, pad):
    """x: [N, H, W, C] -> patches^T [k*k*C, N*Ho*Wo], row order (kh, kw, c),
    column order (n, ho, wo)."""
    N, H, W, C = x_nhwc.shape
    xp = jnp.pad(x_nhwc, ((0, 0), (pad, pad), (pad, pad), (0, 0)))
    Ho = (H + 2 * pad - k) // stride + 1
    Wo = (W + 2 * pad - k) // stride + 1
    rows = []
    for kh in range(k):
        for kw in range(k):
            sl = xp[:, kh:kh + Ho * stride:stride, kw:kw + Wo * stride:stride, :]
            rows.append(jnp.transpose(sl, (3, 0, 1, 2)).reshape(C, N * Ho * Wo))
    return jnp.concatenate(rows, axis=0), Ho, Wo


def _fold_and_stack_weights(params, k):
    """Fold 1x1 projections into 3x3 weights, stack the 3 branches along Cout,
    and flatten to [3*Cout, k*k*Cin] with column order (kh, kw, cin)."""
    w_main = params["w_main"]                      # [O, Cin, k, k]
    w_lp = params["w_lp"][:, :, 0, 0]              # [Cp, Cin]
    w_rp = params["w_rp"][:, :, 0, 0]              # [Cp, Cin]
    # conv1x1 -> conv3x3 composes into one conv3x3 (done in f32 before the bf16 cast)
    w_left_eff = jnp.einsum("ocst,ci->oist", params["w_left"], w_lp)
    w_right_eff = jnp.einsum("ocst,ci->oist", params["w_right"], w_rp)
    w_all = jnp.concatenate([w_main, w_left_eff, w_right_eff], axis=0)   # [3O, Cin, k, k]
    b_all = jnp.concatenate([params["b_main"], params["b_left"], params["b_right"]])
    o3 = w_all.shape[0]
    w_mat = jnp.transpose(w_all, (0, 2, 3, 1)).reshape(o3, -1)           # [3O, k*k*Cin]
    return w_mat, b_all


def mvconv_forward(x_nchw, params, *, k, stride, pad):
    N, Cin, H, W = x_nchw.shape
    Cout = params["w_main"].shape[0]

    x = jnp.transpose(x_nchw, (0, 2, 3, 1)).astype(jnp.float32)          # NHWC
    patches_t, Ho, Wo = _im2col_transposed(x, k, stride, pad)            # [K, M]
    w_mat, b_all = _fold_and_stack_weights(params, k)                    # [3O, K], [3O]

    out = mvconv_fused_call(
        w_mat.astype(jnp.bfloat16),
        patches_t.astype(jnp.bfloat16),
        b_all.reshape(-1, 1).astype(jnp.float32),
        Cout,
    )                                                                    # [Cout, M]

    out = out.reshape(Cout, N, Ho, Wo)
    return jnp.transpose(out, (1, 0, 2, 3))                              # NCHW


# ------------------------- pure-JAX reference -------------------------

def _conv_ref(x_nchw, w, b, stride, pad):
    y = jax.lax.conv_general_dilated(
        x_nchw, w, (stride, stride), [(pad, pad), (pad, pad)],
        dimension_numbers=("NCHW", "OIHW", "NCHW"))
    if b is not None:
        y = y + b.reshape(1, -1, 1, 1)
    return y


def _bn_ref(y, gamma, eps=_BN_EPS):
    mean = y.mean(axis=(0, 2, 3), keepdims=True)
    var = ((y - mean) ** 2).mean(axis=(0, 2, 3), keepdims=True)
    return gamma * (y - mean) / jnp.sqrt(var + eps)


def mvconv_reference(x, p, *, k, stride, pad):
    g = _BN_GAMMA
    ym = _conv_ref(x, p["w_main"], p["b_main"], stride, pad)
    xl = _conv_ref(x, p["w_lp"], None, 1, 0)
    xr = _conv_ref(x, p["w_rp"], None, 1, 0)
    yl = _conv_ref(xl, p["w_left"], p["b_left"], stride, pad)
    yr = _conv_ref(xr, p["w_right"], p["b_right"], stride, pad)
    return _bn_ref(ym, g) + _bn_ref(yl, g) + _bn_ref(yr, g)


# ------------------------- main -------------------------

if __name__ == "__main__":
    in_channels, out_channels = 16, 16
    k, stride, pad = 3, 1, 1
    PROJECTION_RATIO = 2
    Cp = in_channels if in_channels // PROJECTION_RATIO < 8 else in_channels // PROJECTION_RATIO
    N, H, W = 2, 16, 16

    key = jax.random.PRNGKey(0)
    ks = jax.random.split(key, 9)
    scale = 0.1
    x = jax.random.normal(ks[0], (N, in_channels, H, W), jnp.float32)
    params = dict(
        w_main=jax.random.normal(ks[1], (out_channels, in_channels, k, k), jnp.float32) * scale,
        b_main=jax.random.normal(ks[2], (out_channels,), jnp.float32) * scale,
        w_lp=jax.random.normal(ks[3], (Cp, in_channels, 1, 1), jnp.float32) * scale,
        w_rp=jax.random.normal(ks[4], (Cp, in_channels, 1, 1), jnp.float32) * scale,
        w_left=jax.random.normal(ks[5], (out_channels, Cp, k, k), jnp.float32) * scale,
        b_left=jax.random.normal(ks[6], (out_channels,), jnp.float32) * scale,
        w_right=jax.random.normal(ks[7], (out_channels, Cp, k, k), jnp.float32) * scale,
        b_right=jax.random.normal(ks[8], (out_channels,), jnp.float32) * scale,
    )

    out = mvconv_forward(x, params, k=k, stride=stride, pad=pad)
    out = jax.block_until_ready(out)

    ref = mvconv_reference(x, params, k=k, stride=stride, pad=pad)
    assert out.shape == ref.shape == (N, out_channels, H, W)
    max_err = float(jnp.max(jnp.abs(out - ref)))
    assert max_err < 2e-2, f"max abs error {max_err}"
    print("KERNEL_OK")
</pallas_src>

<mosaic_0001>
module attributes {stable_mosaic.version = 11 : i64} {
  func.func @_mvconv_fused_kernel(%arg0: memref<48x144xbf16, #tpu.memory_space<vmem>>, %arg1: memref<144x512xbf16, #tpu.memory_space<vmem>>, %arg2: memref<48x1xf32, #tpu.memory_space<vmem>>, %arg3: memref<16x512xf32, #tpu.memory_space<vmem>>) attributes {dimension_semantics = [], scalar_prefetch = 0 : i64, scratch_operands = 0 : i64, tpu.core_type = #tpu.core_type<tc>} {
    %c0 = arith.constant 0 : index
    %c0_0 = arith.constant 0 : index
    %0 = vector.load %arg0[%c0, %c0_0] : memref<48x144xbf16, #tpu.memory_space<vmem>>, vector<48x144xbf16>
    %c0_1 = arith.constant 0 : index
    %c0_2 = arith.constant 0 : index
    %1 = vector.load %arg1[%c0_1, %c0_2] : memref<144x512xbf16, #tpu.memory_space<vmem>>, vector<144x512xbf16>
    %cst = arith.constant dense<0.000000e+00> : vector<48x512xf32>
    %2 = tpu.matmul %0, %1, %cst {dimension_numbers = #tpu.dot_dimension_numbers<[1], [0], [0], [1], [0, 0, 1, 1], [], []>} : vector<48x144xbf16>, vector<144x512xbf16>, vector<48x512xf32> -> vector<48x512xf32>
    %c0_3 = arith.constant 0 : index
    %c0_4 = arith.constant 0 : index
    %3 = vector.load %arg2[%c0_3, %c0_4] : memref<48x1xf32, #tpu.memory_space<vmem>>, vector<48x1xf32>
    %4 = vector.broadcast %3 : vector<48x1xf32> to vector<48x512xf32>
    %5 = arith.addf %2, %4 : vector<48x512xf32>
    %cst_5 = arith.constant dense<0.000000e+00> : vector<48xf32>
    %6 = vector.multi_reduction <add>, %5, %cst_5 [1] : vector<48x512xf32> to vector<48xf32>
    %7 = vector.shape_cast %6 : vector<48xf32> to vector<48x1xf32>
    %cst_6 = arith.constant 5.120000e+02 : f32
    %8 = vector.broadcast %cst_6 : f32 to vector<48x1xf32>
    %9 = arith.divf %7, %8 : vector<48x1xf32>
    %10 = vector.broadcast %9 : vector<48x1xf32> to vector<48x512xf32>
    %11 = arith.subf %5, %10 : vector<48x512xf32>
    %12 = arith.mulf %11, %11 : vector<48x512xf32>
    %cst_7 = arith.constant dense<0.000000e+00> : vector<48xf32>
    %13 = vector.multi_reduction <add>, %12, %cst_7 [1] : vector<48x512xf32> to vector<48xf32>
    %14 = vector.shape_cast %13 : vector<48xf32> to vector<48x1xf32>
    %cst_8 = arith.constant 5.120000e+02 : f32
    %15 = vector.broadcast %cst_8 : f32 to vector<48x1xf32>
    %16 = arith.divf %14, %15 : vector<48x1xf32>
    %17 = vector.broadcast %9 : vector<48x1xf32> to vector<48x512xf32>
    %18 = arith.subf %5, %17 : vector<48x512xf32>
    %cst_9 = arith.constant 3.333000e-01 : f32
    %19 = vector.broadcast %cst_9 : f32 to vector<48x512xf32>
    %20 = arith.mulf %19, %18 : vector<48x512xf32>
    %cst_10 = arith.constant 9.99999974E-6 : f32
    %21 = vector.broadcast %cst_10 : f32 to vector<48x1xf32>
    %22 = arith.addf %16, %21 : vector<48x1xf32>
    %23 = math.rsqrt %22 : vector<48x1xf32>
    %24 = vector.broadcast %23 : vector<48x1xf32> to vector<48x512xf32>
    %25 = arith.mulf %20, %24 : vector<48x512xf32>
    %26 = vector.extract_strided_slice %25 {offsets = [0, 0], sizes = [16, 512], strides = [1, 1]} : vector<48x512xf32> to vector<16x512xf32>
    %27 = vector.extract_strided_slice %25 {offsets = [16, 0], sizes = [16, 512], strides = [1, 1]} : vector<48x512xf32> to vector<16x512xf32>
    %28 = arith.addf %26, %27 : vector<16x512xf32>
    %29 = vector.extract_strided_slice %25 {offsets = [32, 0], sizes = [16, 512], strides = [1, 1]} : vector<48x512xf32> to vector<16x512xf32>
    %30 = arith.addf %28, %29 : vector<16x512xf32>
    %c0_11 = arith.constant 0 : index
    %c0_12 = arith.constant 0 : index
    %31 = vector.load %arg3[%c0_11, %c0_12] : memref<16x512xf32, #tpu.memory_space<vmem>>, vector<16x512xf32>
    tpu.vector_store %arg3[%c0_11, %c0_12], %30 {strides = array<i32>} : memref<16x512xf32, #tpu.memory_space<vmem>>, vector<16x512xf32>,
    return
  }
}

</mosaic_0001>

<llo_original>
// kernel: tpu_custom_call.1
$region0: #{tpu_custom_call.1}
  #allocation0 [shape = 'u32[]', space=smem, size = 0x4, offset = 0x4, fixed_abs, tag = 'smem constant byte address 0x4 - core index']
  #allocation1 [shape = 'u32[144,128]{1,0:T(1,128)}', space=vmem, size = 0x12000, scoped, tag = 'internal scratch']
  %s0 = inlined_call_operand.vmem [shape: bf16[48,144], index: 0, kind: input, shape index: {}]
  %s1 = inlined_call_operand.hbm [shape: bf16[144,512], index: 1, kind: input, shape index: {}]
  %s2 = inlined_call_operand.vmem [shape: f32[48,1], index: 2, kind: input, shape index: {}]
  %s3 = inlined_call_operand.hbm [shape: f32[16,512], index: 3, kind: output, shape index: {}]
  %s4 = sld [smem:[#allocation0]]
  $region26: #{tpu_custom_call.1} parent=0
    _
  %s6 = ssub.s32 1, %s4
  %s7 = scalar_select 0, %s6, %s4
  $region1: #{tpu_custom_call.1} parent=0
    #allocation2 [shape = 'u8[147456]{0}', space=vmem, size = 0x24000, scoped, tag = 'input window, operand 1, single buffered']
    #allocation3 [shape = 's32[1]{0}', space=sflag, size = 0x4, scoped, tag = 'scoped memory for tpu_custom_call.1']
    #allocation4 [shape = 's32[1]{0}', space=sflag, size = 0x4, scoped, tag = 'scoped memory for tpu_custom_call.1']
    #allocation5 [shape = 'u8[32768]{0}', space=vmem, size = 0x8000, scoped, tag = 'output window, operand 0, single buffered']
    %8 = vsyncpa [#allocation3], 0
    %9 = vsyncpa [#allocation4], 0
    // Predicated region
    $region2: #{tpu_custom_call.1} parent=1 // pred_check
      _
    $region3: #{tpu_custom_call.1} parent=1 // pred_check_branch
      %11 = sbr.rel (0) target = $region5
    $region4: #{tpu_custom_call.1} parent=1 // pred_region
      _
    $region5: #{tpu_custom_call.1} parent=1 // pred_fallthru
      _
    // Predicated region
    $region6: #{tpu_custom_call.1} parent=1 // pred_check
      _
    $region7: #{tpu_custom_call.1} parent=1 // pred_check_branch
      %13 = sbr.rel (0) target = $region9
    $region8: #{tpu_custom_call.1} parent=1 // pred_region
      %s15 = ssub.s32 4608, 4608
      %16 = vsyncadd [#allocation3], %s15
      %s17 = sshll.u32 [#allocation2], 4
      %s18 = int_to_ptr.vmem [resolvable:$true] %s17
      %23 = dma.hbm_to_vmem [thread:$0]  %s1, 4608, %s18, [#allocation3], 256, 256, 16
    $region9: #{tpu_custom_call.1} parent=1 // pred_fallthru
      _
    // Predicated region
    $region10: #{tpu_custom_call.1} parent=1 // pred_check
      _
    $region11: #{tpu_custom_call.1} parent=1 // pred_check_branch
      %25 = sbr.rel (0) target = $region13
    $region12: #{tpu_custom_call.1} parent=1 // pred_region
      _
    $region13: #{tpu_custom_call.1} parent=1 // pred_fallthru
      _
    // Predicated region
    $region14: #{tpu_custom_call.1} parent=1 // pred_check
      _
    $region15: #{tpu_custom_call.1} parent=1 // pred_check_branch
      %27 = sbr.rel (0) target = $region17
    $region16: #{tpu_custom_call.1} parent=1 // pred_region
      %28 = dma.done [#allocation3], 4608
    $region17: #{tpu_custom_call.1} parent=1 // pred_fallthru
      _
    %v30 = vld [vmem:[%s0] sm:$0xff]
    %v31 = vld [vmem:[%s0 + $0x8] sm:$0xff]
    %v32 = vld [vmem:[%s0 + $0x10] sm:$0xff]
    %v33 = vld [vmem:[%s0 + $0x18] sm:$0xff]
    %v34 = vld [vmem:[%s0 + $0x20] sm:$0xff]
    %v35 = vld [vmem:[%s0 + $0x28] sm:$0xff]
    %v36 = vld [vmem:[#allocation2] sm:$0xff]
    %v37 = vld [vmem:[#allocation2 + $0x8] sm:$0xff]
    %v38 = vld [vmem:[#allocation2 + $0x10] sm:$0xff]
    %v39 = vld [vmem:[#allocation2 + $0x18] sm:$0xff]
    %v40 = vld [vmem:[#allocation2 + $0x20] sm:$0xff]
    %v41 = vld [vmem:[#allocation2 + $0x28] sm:$0xff]
    %v42 = vld [vmem:[#allocation2 + $0x30] sm:$0xff]
    %v43 = vld [vmem:[#allocation2 + $0x38] sm:$0xff]
    %v44 = vld [vmem:[#allocation2 + $0x40] sm:$0xff]
    %v45 = vld [vmem:[#allocation2 + $0x48] sm:$0xff]
    %v46 = vld [vmem:[#allocation2 + $0x50] sm:$0xff]
    %v47 = vld [vmem:[#allocation2 + $0x58] sm:$0xff]
    %v48 = vld [vmem:[#allocation2 + $0x60] sm:$0xff]
    %v49 = vld [vmem:[#allocation2 + $0x68] sm:$0xff]
    %v50 = vld [vmem:[#allocation2 + $0x70] sm:$0xff]
    %v51 = vld [vmem:[#allocation2 + $0x78] sm:$0xff]
    %v52 = vld [vmem:[#allocation2 + $0x80] sm:$0xff]
    %v53 = vld [vmem:[#allocation2 + $0x88] sm:$0xff]
    %v54 = vld [vmem:[#allocation2 + $0x90] sm:$0xff]
    %v55 = vld [vmem:[#allocation2 + $0x98] sm:$0xff]
    %v56 = vld [vmem:[#allocation2 + $0xa0] sm:$0xff]
    %v57 = vld [vmem:[#allocation2 + $0xa8] sm:$0xff]
    %v58 = vld [vmem:[#allocation2 + $0xb0] sm:$0xff]
    %v59 = vld [vmem:[#allocation2 + $0xb8] sm:$0xff]
    %v60 = vld [vmem:[#allocation2 + $0xc0] sm:$0xff]
    %v61 = vld [vmem:[#allocation2 + $0xc8] sm:$0xff]
    %v62 = vld [vmem:[#allocation2 + $0xd0] sm:$0xff]
    %v63 = vld [vmem:[#allocation2 + $0xd8] sm:$0xff]
    %v64 = vld [vmem:[#allocation2 + $0xe0] sm:$0xff]
    %v65 = vld [vmem:[#allocation2 + $0xe8] sm:$0xff]
    %v66 = vld [vmem:[#allocation2 + $0xf0] sm:$0xff]
    %v67 = vld [vmem:[#allocation2 + $0xf8] sm:$0xff]
    %v68 = vld [vmem:[#allocation2 + $0x100] sm:$0xff]
    %v69 = vld [vmem:[#allocation2 + $0x108] sm:$0xff]
    %v70 = vld [vmem:[#allocation2 + $0x110] sm:$0xff]
    %v71 = vld [vmem:[#allocation2 + $0x118] sm:$0xff]
    %v72 = vld [vmem:[%s2] sm:$0xff]
    %v73 = vld [vmem:[%s2 + $0x8] sm:$0xff]
    %v74 = vld [vmem:[%s2 + $0x10] sm:$0xff]
    %v75 = vld [vmem:[%s2 + $0x18] sm:$0xff]
    %v76 = vld [vmem:[%s2 + $0x20] sm:$0xff]
    %v77 = vld [vmem:[%s2 + $0x28] sm:$0xff]
    %79 = vset.pattern.permute.xlu0 0
    %80 = vperm.xlu0 %79, %v72
    %v81 = vpop.permute.xlu0 %80
    %84 = vset.pattern.permute.xlu0 0
    %85 = vperm.xlu0 %84, %v73
    %v86 = vpop.permute.xlu0 %85
    %89 = vset.pattern.permute.xlu0 0
    %90 = vperm.xlu0 %89, %v74
    %v91 = vpop.permute.xlu0 %90
    %94 = vset.pattern.permute.xlu0 0
    %95 = vperm.xlu0 %94, %v75
    %v96 = vpop.permute.xlu0 %95
    %99 = vset.pattern.permute.xlu0 0
    %100 = vperm.xlu0 %99, %v76
    %v101 = vpop.permute.xlu0 %100
    %104 = vset.pattern.permute.xlu0 0
    %105 = vperm.xlu0 %104, %v77
    %v106 = vpop.permute.xlu0 %105
    %v114 = vunpack.c.l.b16 %v30
    %v115 = vunpack.c.h.b16 %v30
    %v116 = vunpack.c.l.b16 %v31
    %v117 = vunpack.c.h.b16 %v31
    %v118 = vunpack.c.l.b16 %v32
    %v119 = vunpack.c.h.b16 %v32
    %v120 = vunpack.c.l.b16 %v33
    %v121 = vunpack.c.h.b16 %v33
    %v122 = vunpack.c.l.b16 %v34
    %v123 = vunpack.c.h.b16 %v34
    %v124 = vunpack.c.l.b16 %v35
    %v125 = vunpack.c.h.b16 %v35
    %v126 = vpack.c.b16 %v116, %v114
    %v127 = vpack.c.b16 %v117, %v115
    %v128 = vpack.c.b16 %v120, %v118
    %v129 = vpack.c.b16 %v121, %v119
    %v130 = vpack.c.b16 %v124, %v122
    %v131 = vpack.c.b16 %v125, %v123
    %v171 = vunpack.c.l.b16 %v36
    %v172 = vunpack.c.h.b16 %v36
    %v173 = vunpack.c.l.b16 %v37
    %v174 = vunpack.c.h.b16 %v37
    %v175 = vunpack.c.l.b16 %v38
    %v176 = vunpack.c.h.b16 %v38
    %v177 = vunpack.c.l.b16 %v39
    %v178 = vunpack.c.h.b16 %v39
    %v179 = vunpack.c.l.b16 %v40
    %v180 = vunpack.c.h.b16 %v40
    %v181 = vunpack.c.l.b16 %v41
    %v182 = vunpack.c.h.b16 %v41
    %v183 = vunpack.c.l.b16 %v42
    %v184 = vunpack.c.h.b16 %v42
    %v185 = vunpack.c.l.b16 %v43
    %v186 = vunpack.c.h.b16 %v43
    %v187 = vunpack.c.l.b16 %v44
    %v188 = vunpack.c.h.b16 %v44
    %v189 = vunpack.c.l.b16 %v45
    %v190 = vunpack.c.h.b16 %v45
    %v191 = vunpack.c.l.b16 %v46
    %v192 = vunpack.c.h.b16 %v46
    %v193 = vunpack.c.l.b16 %v47
    %v194 = vunpack.c.h.b16 %v47
    %v195 = vunpack.c.l.b16 %v48
    %v196 = vunpack.c.h.b16 %v48
    %v197 = vunpack.c.l.b16 %v49
    %v198 = vunpack.c.h.b16 %v49
    %v199 = vunpack.c.l.b16 %v50
    %v200 = vunpack.c.h.b16 %v50
    %v201 = vunpack.c.l.b16 %v51
    %v202 = vunpack.c.h.b16 %v51
    %v203 = vunpack.c.l.b16 %v52
    %v204 = vunpack.c.h.b16 %v52
    %v205 = vunpack.c.l.b16 %v53
    %v206 = vunpack.c.h.b16 %v53
    %v207 = vunpack.c.l.b16 %v54
    %v208 = vunpack.c.h.b16 %v54
    %v209 = vunpack.c.l.b16 %v55
    %v210 = vunpack.c.h.b16 %v55
    %v211 = vunpack.c.l.b16 %v56
    %v212 = vunpack.c.h.b16 %v56
    %v213 = vunpack.c.l.b16 %v57
    %v214 = vunpack.c.h.b16 %v57
    %v215 = vunpack.c.l.b16 %v58
    %v216 = vunpack.c.h.b16 %v58
    %v217 = vunpack.c.l.b16 %v59
    %v218 = vunpack.c.h.b16 %v59
    %v219 = vunpack.c.l.b16 %v60
    %v220 = vunpack.c.h.b16 %v60
    %v221 = vunpack.c.l.b16 %v61
    %v222 = vunpack.c.h.b16 %v61
    %v223 = vunpack.c.l.b16 %v62
    %v224 = vunpack.c.h.b16 %v62
    %v225 = vunpack.c.l.b16 %v63
    %v226 = vunpack.c.h.b16 %v63
    %v227 = vunpack.c.l.b16 %v64
    %v228 = vunpack.c.h.b16 %v64
    %v229 = vunpack.c.l.b16 %v65
    %v230 = vunpack.c.h.b16 %v65
    %v231 = vunpack.c.l.b16 %v66
    %v232 = vunpack.c.h.b16 %v66
    %v233 = vunpack.c.l.b16 %v67
    %v234 = vunpack.c.h.b16 %v67
    %v235 = vunpack.c.l.b16 %v68
    %v236 = vunpack.c.h.b16 %v68
    %v237 = vunpack.c.l.b16 %v69
    %v238 = vunpack.c.h.b16 %v69
    %v239 = vunpack.c.l.b16 %v70
    %v240 = vunpack.c.h.b16 %v70
    %v241 = vunpack.c.l.b16 %v71
    %v242 = vunpack.c.h.b16 %v71
    %v243 = vpack.c.b16 %v175, %v171
    %v244 = vpack.c.b16 %v176, %v172
    %v245 = vpack.c.b16 %v177, %v173
    %v246 = vpack.c.b16 %v178, %v174
    %v247 = vpack.c.b16 %v183, %v179
    %v248 = vpack.c.b16 %v184, %v180
    %v249 = vpack.c.b16 %v185, %v181
    %v250 = vpack.c.b16 %v186, %v182
    %v251 = vpack.c.b16 %v191, %v187
    %v252 = vpack.c.b16 %v192, %v188
    %v253 = vpack.c.b16 %v193, %v189
    %v254 = vpack.c.b16 %v194, %v190
    %v255 = vpack.c.b16 %v199, %v195
    %v256 = vpack.c.b16 %v200, %v196
    %v257 = vpack.c.b16 %v201, %v197
    %v258 = vpack.c.b16 %v202, %v198
    %v259 = vpack.c.b16 %v207, %v203
    %v260 = vpack.c.b16 %v208, %v204
    %v261 = vpack.c.b16 %v209, %v205
    %v262 = vpack.c.b16 %v210, %v206
    %v263 = vpack.c.b16 %v215, %v211
    %v264 = vpack.c.b16 %v216, %v212
    %v265 = vpack.c.b16 %v217, %v213
    %v266 = vpack.c.b16 %v218, %v214
    %v267 = vpack.c.b16 %v223, %v219
    %v268 = vpack.c.b16 %v224, %v220
    %v269 = vpack.c.b16 %v225, %v221
    %v270 = vpack.c.b16 %v226, %v222
    %v271 = vpack.c.b16 %v231, %v227
    %v272 = vpack.c.b16 %v232, %v228
    %v273 = vpack.c.b16 %v233, %v229
    %v274 = vpack.c.b16 %v234, %v230
    %v275 = vpack.c.b16 %v239, %v235
    %v276 = vpack.c.b16 %v240, %v236
    %v277 = vpack.c.b16 %v241, %v237
    %v278 = vpack.c.b16 %v242, %v238
    %vm315 = vcmask 130048
    %v317 = vsel %vm315, %v127, 0
    %v320 = vsel %vm315, %v129, 0
    %v323 = vsel %vm315, %v131, 0
    %325 = vmatprep.subr.bf16.mxu0 %v272
    %326 = vmatpush1.bf16.msra.mxu0 %v271
    %327 = vmatprep.subr.bf16.mxu0 %v268
    %328 = vmatpush1.bf16.msra.mxu0 %v267
    %329 = vmatprep.subr.bf16.mxu0 %v264
    %330 = vmatpush1.bf16.msra.mxu0 %v263
    %331 = vmatprep.subr.bf16.mxu0 %v260
    %332 = vmatpush1.bf16.msra.mxu0 %v259
    %333 = vmatprep.subr.bf16.mxu0 %v256
    %334 = vmatpush1.bf16.msra.mxu0 %v255
    %335 = vmatprep.subr.bf16.mxu0 %v252
    %336 = vmatpush1.bf16.msra.mxu0 %v251
    %337 = vmatprep.subr.bf16.mxu0 %v248
    %338 = vmatpush1.bf16.msra.mxu0 %v247
    %339 = vmatprep.subr.bf16.mxu0 %v244
    %340 = vmatpush1.bf16.msra.mxu0 %v243
    %341 = vmatprep.subr.bf16.mxu0 0
    %342 = vmatpush2.bf16.msra.mxu0 0
    %343 = vmatprep.subr.bf16.mxu0 0
    %344 = vmatpush2.bf16.msra.mxu0 0
    %345 = vmatprep.subr.bf16.mxu0 0
    %346 = vmatpush2.bf16.msra.mxu0 0
    %347 = vmatprep.subr.bf16.mxu0 0
    %348 = vmatpush2.bf16.msra.mxu0 0
    %349 = vmatprep.subr.bf16.mxu0 0
    %350 = vmatpush2.bf16.msra.mxu0 0
    %351 = vmatprep.subr.bf16.mxu0 0
    %352 = vmatpush2.bf16.msra.mxu0 0
    %353 = vmatprep.subr.bf16.mxu0 0
    %354 = vmatpush2.bf16.msra.mxu0 0
    %355 = vmatprep.subr.bf16.mxu0 %v276
    %356 = vmatpush2.bf16.msra.mxu0 %v275
    %357 = vmatprep.mubr.bf16.mxu0 %v317
    %358 = vmatmul.mubr.bf16.gmra.mxu0 %v126
    %v359 = vpop.f32.mrf.mxu0
    %v360 = vadd.f32 %v81, %v359
    %v361 = vpop.f32.mrf.mxu0
    %v362 = vadd.f32 %v81, %v361
    %v363 = vpop.f32.mrf.mxu0
    %v364 = vadd.f32 %v86, %v363
    %v365 = vpop.f32.mrf.mxu0
    %v366 = vadd.f32 %v86, %v365
    %367 = vmatprep.mubr.bf16.mxu0 %v320
    %368 = vmatmul.mubr.bf16.gmra.mxu0 %v128
    %v369 = vpop.f32.mrf.mxu0
    %v370 = vadd.f32 %v91, %v369
    %v371 = vpop.f32.mrf.mxu0
    %v372 = vadd.f32 %v91, %v371
    %v373 = vpop.f32.mrf.mxu0
    %v374 = vadd.f32 %v96, %v373
    %v375 = vpop.f32.mrf.mxu0
    %v376 = vadd.f32 %v96, %v375
    %377 = vmatprep.mubr.bf16.mxu0 %v323
    %378 = vmatmul.mubr.bf16.gmra.mxu0 %v130
    %v379 = vpop.f32.mrf.mxu0
    %v380 = vadd.f32 %v101, %v379
    %v381 = vpop.f32.mrf.mxu0
    %v382 = vadd.f32 %v101, %v381
    %v383 = vpop.f32.mrf.mxu0
    %v384 = vadd.f32 %v106, %v383
    %v385 = vpop.f32.mrf.mxu0
    %v386 = vadd.f32 %v106, %v385
    %387 = vdwg.mxu0
    %388 = vmatprep.subr.bf16.mxu0 %v274
    %389 = vmatpush1.bf16.msra.mxu0 %v273
    %390 = vmatprep.subr.bf16.mxu0 %v270
    %391 = vmatpush1.bf16.msra.mxu0 %v269
    %392 = vmatprep.subr.bf16.mxu0 %v266
    %393 = vmatpush1.bf16.msra.mxu0 %v265
    %394 = vmatprep.subr.bf16.mxu0 %v262
    %395 = vmatpush1.bf16.msra.mxu0 %v261
    %396 = vmatprep.subr.bf16.mxu0 %v258
    %397 = vmatpush1.bf16.msra.mxu0 %v257
    %398 = vmatprep.subr.bf16.mxu0 %v254
    %399 = vmatpush1.bf16.msra.mxu0 %v253
    %400 = vmatprep.subr.bf16.mxu0 %v250
    %401 = vmatpush1.bf16.msra.mxu0 %v249
    %402 = vmatprep.subr.bf16.mxu0 %v246
    %403 = vmatpush1.bf16.msra.mxu0 %v245
    %404 = vmatprep.subr.bf16.mxu0 0
    %405 = vmatpush2.bf16.msra.mxu0 0
    %406 = vmatprep.subr.bf16.mxu0 0
    %407 = vmatpush2.bf16.msra.mxu0 0
    %408 = vmatprep.subr.bf16.mxu0 0
    %409 = vmatpush2.bf16.msra.mxu0 0
    %410 = vmatprep.subr.bf16.mxu0 0
    %411 = vmatpush2.bf16.msra.mxu0 0
    %412 = vmatprep.subr.bf16.mxu0 0
    %413 = vmatpush2.bf16.msra.mxu0 0
    %414 = vmatprep.subr.bf16.mxu0 0
    %415 = vmatpush2.bf16.msra.mxu0 0
    %416 = vmatprep.subr.bf16.mxu0 0
    %417 = vmatpush2.bf16.msra.mxu0 0
    %418 = vmatprep.subr.bf16.mxu0 %v278
    %419 = vmatpush2.bf16.msra.mxu0 %v277
    %420 = vmatprep.mubr.bf16.mxu0 %v317
    %421 = vmatmul.mubr.bf16.gmra.mxu0 %v126
    %v422 = vpop.f32.mrf.mxu0
    %v423 = vadd.f32 %v81, %v422
    %v424 = vpop.f32.mrf.mxu0
    %v425 = vadd.f32 %v81, %v424
    %v426 = vpop.f32.mrf.mxu0
    %v427 = vadd.f32 %v86, %v426
    %v428 = vpop.f32.mrf.mxu0
    %v429 = vadd.f32 %v86, %v428
    %430 = vmatprep.mubr.bf16.mxu0 %v320
    %431 = vmatmul.mubr.bf16.gmra.mxu0 %v128
    %v432 = vpop.f32.mrf.mxu0
    %v433 = vadd.f32 %v91, %v432
    %v434 = vpop.f32.mrf.mxu0
    %v435 = vadd.f32 %v91, %v434
    %v436 = vpop.f32.mrf.mxu0
    %v437 = vadd.f32 %v96, %v436
    %v438 = vpop.f32.mrf.mxu0
    %v439 = vadd.f32 %v96, %v438
    %440 = vmatprep.mubr.bf16.mxu0 %v323
    %441 = vmatmul.mubr.bf16.gmra.mxu0 %v130
    %v442 = vpop.f32.mrf.mxu0
    %v443 = vadd.f32 %v101, %v442
    %v444 = vpop.f32.mrf.mxu0
    %v445 = vadd.f32 %v101, %v444
    %v446 = vpop.f32.mrf.mxu0
    %v447 = vadd.f32 %v106, %v446
    %v448 = vpop.f32.mrf.mxu0
    %v449 = vadd.f32 %v106, %v448
    %450 = vdwg.mxu0
    %v451 = vadd.f32 %v360, %v362
    %v452 = vadd.f32 %v451, %v423
    %v453 = vadd.f32 %v452, %v425
    %454 = vadd.xlane.f32.xlu0 %v453
    %v455 = vpop.xlane.xlu0 %454
    %v456 = vadd.f32 %v364, %v366
    %v457 = vadd.f32 %v456, %v427
    %v458 = vadd.f32 %v457, %v429
    %459 = vadd.xlane.f32.xlu0 %v458
    %v460 = vpop.xlane.xlu0 %459
    %v461 = vadd.f32 %v370, %v372
    %v462 = vadd.f32 %v461, %v433
    %v463 = vadd.f32 %v462, %v435
    %464 = vadd.xlane.f32.xlu0 %v463
    %v465 = vpop.xlane.xlu0 %464
    %v466 = vadd.f32 %v374, %v376
    %v467 = vadd.f32 %v466, %v437
    %v468 = vadd.f32 %v467, %v439
    %469 = vadd.xlane.f32.xlu0 %v468
    %v470 = vpop.xlane.xlu0 %469
    %v471 = vadd.f32 %v380, %v382
    %v472 = vadd.f32 %v471, %v443
    %v473 = vadd.f32 %v472, %v445
    %474 = vadd.xlane.f32.xlu0 %v473
    %v475 = vpop.xlane.xlu0 %474
    %v476 = vadd.f32 %v384, %v386
    %v477 = vadd.f32 %v476, %v447
    %v478 = vadd.f32 %v477, %v449
    %479 = vadd.xlane.f32.xlu0 %v478
    %v480 = vpop.xlane.xlu0 %479
    %v481 = vrcp.pop 512.0
    %v482 = vmul.f32 %v455, %v481
    %v483 = vmul.f32 %v460, %v481
    %v484 = vmul.f32 %v465, %v481
    %v485 = vmul.f32 %v470, %v481
    %v486 = vmul.f32 %v475, %v481
    %v487 = vmul.f32 %v480, %v481
    %v488 = vsub.f32 %v360, %v482
    %v489 = vsub.f32 %v362, %v482
    %v490 = vsub.f32 %v423, %v482
    %v491 = vsub.f32 %v425, %v482
    %v492 = vsub.f32 %v364, %v483
    %v493 = vsub.f32 %v366, %v483
    %v494 = vsub.f32 %v427, %v483
    %v495 = vsub.f32 %v429, %v483
    %v496 = vsub.f32 %v370, %v484
    %v497 = vsub.f32 %v372, %v484
    %v498 = vsub.f32 %v433, %v484
    %v499 = vsub.f32 %v435, %v484
    %v500 = vsub.f32 %v374, %v485
    %v501 = vsub.f32 %v376, %v485
    %v502 = vsub.f32 %v437, %v485
    %v503 = vsub.f32 %v439, %v485
    %v504 = vsub.f32 %v380, %v486
    %v505 = vsub.f32 %v382, %v486
    %v506 = vsub.f32 %v443, %v486
    %v507 = vsub.f32 %v445, %v486
    %v508 = vsub.f32 %v384, %v487
    %v509 = vsub.f32 %v386, %v487
    %v510 = vsub.f32 %v447, %v487
    %v511 = vsub.f32 %v449, %v487
    %v512 = vmul.f32 %v488, %v488
    %v513 = vmul.f32 %v489, %v489
    %v514 = vmul.f32 %v490, %v490
    %v515 = vmul.f32 %v491, %v491
    %v516 = vmul.f32 %v492, %v492
    %v517 = vmul.f32 %v493, %v493
    %v518 = vmul.f32 %v494, %v494
    %v519 = vmul.f32 %v495, %v495
    %v520 = vmul.f32 %v496, %v496
    %v521 = vmul.f32 %v497, %v497
    %v522 = vmul.f32 %v498, %v498
    %v523 = vmul.f32 %v499, %v499
    %v524 = vmul.f32 %v500, %v500
    %v525 = vmul.f32 %v501, %v501
    %v526 = vmul.f32 %v502, %v502
    %v527 = vmul.f32 %v503, %v503
    %v528 = vmul.f32 %v504, %v504
    %v529 = vmul.f32 %v505, %v505
    %v530 = vmul.f32 %v506, %v506
    %v531 = vmul.f32 %v507, %v507
    %v532 = vmul.f32 %v508, %v508
    %v533 = vmul.f32 %v509, %v509
    %v534 = vmul.f32 %v510, %v510
    %v535 = vmul.f32 %v511, %v511
    %v536 = vadd.f32 %v512, %v513
    %v537 = vadd.f32 %v536, %v514
    %v538 = vadd.f32 %v537, %v515
    %539 = vadd.xlane.f32.xlu0 %v538
    %v540 = vpop.xlane.xlu0 %539
    %v541 = vadd.f32 %v516, %v517
    %v542 = vadd.f32 %v541, %v518
    %v543 = vadd.f32 %v542, %v519
    %544 = vadd.xlane.f32.xlu0 %v543
    %v545 = vpop.xlane.xlu0 %544
    %v546 = vadd.f32 %v520, %v521
    %v547 = vadd.f32 %v546, %v522
    %v548 = vadd.f32 %v547, %v523
    %549 = vadd.xlane.f32.xlu0 %v548
    %v550 = vpop.xlane.xlu0 %549
    %v551 = vadd.f32 %v524, %v525
    %v552 = vadd.f32 %v551, %v526
    %v553 = vadd.f32 %v552, %v527
    %554 = vadd.xlane.f32.xlu0 %v553
    %v555 = vpop.xlane.xlu0 %554
    %v556 = vadd.f32 %v528, %v529
    %v557 = vadd.f32 %v556, %v530
    %v558 = vadd.f32 %v557, %v531
    %559 = vadd.xlane.f32.xlu0 %v558
    %v560 = vpop.xlane.xlu0 %559
    %v561 = vadd.f32 %v532, %v533
    %v562 = vadd.f32 %v561, %v534
    %v563 = vadd.f32 %v562, %v535
    %564 = vadd.xlane.f32.xlu0 %v563
    %v565 = vpop.xlane.xlu0 %564
    %v566 = vmul.f32 %v540, %v481
    %v567 = vmul.f32 %v545, %v481
    %v568 = vmul.f32 %v550, %v481
    %v569 = vmul.f32 %v555, %v481
    %v570 = vmul.f32 %v560, %v481
    %v571 = vmul.f32 %v565, %v481
    %v572 = vmul.f32 %v488, 0.3333
    %v573 = vmul.f32 %v489, 0.3333
    %v574 = vmul.f32 %v490, 0.3333
    %v575 = vmul.f32 %v491, 0.3333
    %v576 = vmul.f32 %v492, 0.3333
    %v577 = vmul.f32 %v493, 0.3333
    %v578 = vmul.f32 %v494, 0.3333
    %v579 = vmul.f32 %v495, 0.3333
    %v580 = vmul.f32 %v496, 0.3333
    %v581 = vmul.f32 %v497, 0.3333
    %v582 = vmul.f32 %v498, 0.3333
    %v583 = vmul.f32 %v499, 0.3333
    %v584 = vmul.f32 %v500, 0.3333
    %v585 = vmul.f32 %v501, 0.3333
    %v586 = vmul.f32 %v502, 0.3333
    %v587 = vmul.f32 %v503, 0.3333
    %v588 = vmul.f32 %v504, 0.3333
    %v589 = vmul.f32 %v505, 0.3333
    %v590 = vmul.f32 %v506, 0.3333
    %v591 = vmul.f32 %v507, 0.3333
    %v592 = vmul.f32 %v508, 0.3333
    %v593 = vmul.f32 %v509, 0.3333
    %v594 = vmul.f32 %v510, 0.3333
    %v595 = vmul.f32 %v511, 0.3333
    %v596 = vadd.f32 %v566, 1e-05
    %v597 = vadd.f32 %v567, 1e-05
    %v598 = vadd.f32 %v568, 1e-05
    %v599 = vadd.f32 %v569, 1e-05
    %v600 = vadd.f32 %v570, 1e-05
    %v601 = vadd.f32 %v571, 1e-05
    %v602 = vrsqrt.pop %v596
    %v603 = vrsqrt.pop %v597
    %v604 = vrsqrt.pop %v598
    %v605 = vrsqrt.pop %v599
    %v606 = vrsqrt.pop %v600
    %v607 = vrsqrt.pop %v601
    %v608 = vmul.f32 %v572, %v602
    %v609 = vmul.f32 %v573, %v602
    %v610 = vmul.f32 %v574, %v602
    %v611 = vmul.f32 %v575, %v602
    %v612 = vmul.f32 %v576, %v603
    %v613 = vmul.f32 %v577, %v603
    %v614 = vmul.f32 %v578, %v603
    %v615 = vmul.f32 %v579, %v603
    %v616 = vmul.f32 %v580, %v604
    %v617 = vmul.f32 %v581, %v604
    %v618 = vmul.f32 %v582, %v604
    %v619 = vmul.f32 %v583, %v604
    %v620 = vmul.f32 %v584, %v605
    %v621 = vmul.f32 %v585, %v605
    %v622 = vmul.f32 %v586, %v605
    %v623 = vmul.f32 %v587, %v605
    %v624 = vmul.f32 %v588, %v606
    %v625 = vmul.f32 %v589, %v606
    %v626 = vmul.f32 %v590, %v606
    %v627 = vmul.f32 %v591, %v606
    %v628 = vmul.f32 %v592, %v607
    %v629 = vmul.f32 %v593, %v607
    %v630 = vmul.f32 %v594, %v607
    %v631 = vmul.f32 %v595, %v607
    %v632 = vadd.f32 %v608, %v616
    %v633 = vadd.f32 %v609, %v617
    %v634 = vadd.f32 %v610, %v618
    %v635 = vadd.f32 %v611, %v619
    %v636 = vadd.f32 %v612, %v620
    %v637 = vadd.f32 %v613, %v621
    %v638 = vadd.f32 %v614, %v622
    %v639 = vadd.f32 %v615, %v623
    %v640 = vadd.f32 %v632, %v624
    %v641 = vadd.f32 %v633, %v625
    %v642 = vadd.f32 %v634, %v626
    %v643 = vadd.f32 %v635, %v627
    %v644 = vadd.f32 %v636, %v628
    %v645 = vadd.f32 %v637, %v629
    %v646 = vadd.f32 %v638, %v630
    %v647 = vadd.f32 %v639, %v631
    %648 = vst [vmem:[#allocation5] sm:$0xff] %v640
    %649 = vst [vmem:[#allocation5 + $0x8] sm:$0xff] %v641
    %650 = vst [vmem:[#allocation5 + $0x10] sm:$0xff] %v642
    %651 = vst [vmem:[#allocation5 + $0x18] sm:$0xff] %v643
    %652 = vst [vmem:[#allocation5 + $0x20] sm:$0xff] %v644
    %653 = vst [vmem:[#allocation5 + $0x28] sm:$0xff] %v645
    %654 = vst [vmem:[#allocation5 + $0x30] sm:$0xff] %v646
    %655 = vst [vmem:[#allocation5 + $0x38] sm:$0xff] %v647
    // Predicated region
    $region18: #{tpu_custom_call.1} parent=1 // pred_check
      _
    $region19: #{tpu_custom_call.1} parent=1 // pred_check_branch
      %657 = sbr.rel (0) target = $region21
    $region20: #{tpu_custom_call.1} parent=1 // pred_region
      %s659 = ssub.s32 1024, 1024
      %660 = vsyncadd [#allocation4], %s659
      %s661 = sshll.u32 [#allocation5], 4
      %s662 = int_to_ptr.vmem [resolvable:$true] %s661
      %667 = dma.vmem_to_hbm [thread:$0]  %s662, 1024, %s3, [#allocation4], 512, 512, 32
    $region21: #{tpu_custom_call.1} parent=1 // pred_fallthru
      _
    // Predicated region
    $region22: #{tpu_custom_call.1} parent=1 // pred_check
      _
    $region23: #{tpu_custom_call.1} parent=1 // pred_check_branch
      %669 = sbr.rel (0) target = $region25
    $region24: #{tpu_custom_call.1} parent=1 // pred_region
      %670 = dma.done [#allocation4], 1024
    $region25: #{tpu_custom_call.1} parent=1 // pred_fallthru
      _
    %671 = vsyncpa [#allocation3], 1
    %672 = vsyncpa [#allocation4], 1

</llo_original>
